<compile_context>
chip_gen: v7x
topology: tpu7x:2x2x1
jax: 0.10.0
libtpu: 0.0.40
codegen_flags: <defaults>
</compile_context>

<pallas_src>
import math
from functools import partial

import jax
import jax.numpy as jnp
from jax import lax
from jax.experimental import pallas as pl
from jax.experimental.pallas import tpu as pltpu


def _coattention_kernel(qry_ref, ctx_ref, mask_ref, wq_ref, wkv_ref,
                        bq_ref, bkv_ref, out_ref, *, hidden, n_heads,
                        approx_recip):
    """Processes ONE batch element per grid step.

    qry_ref : (S_Q, H)   bf16
    ctx_ref : (S_C, H)   bf16
    mask_ref: (1, S_C)   f32  additive mask, (1 - attn_mask) * -1e4
    wq_ref  : (H, H)     bf16 (1/sqrt(head_dim) folded in)
    wkv_ref : (H, 2H)    bf16 (Wk | Wv concatenated)
    bq_ref  : (1, H)     f32  (pre-scaled)
    bkv_ref : (1, 2H)    f32
    out_ref : (S_Q, H)   f32
    """
    head_dim = hidden // n_heads

    # Whole-hidden projections: one Q matmul, one fused K|V matmul
    # (bf16 MXU operands, f32 accumulation, f32 bias add).
    q = jnp.dot(qry_ref[...], wq_ref[...],
                preferred_element_type=jnp.float32) + bq_ref[...]
    kv = jnp.dot(ctx_ref[...], wkv_ref[...],
                 preferred_element_type=jnp.float32) + bkv_ref[...]
    k = kv[:, :hidden]
    v = kv[:, hidden:]

    add_mask = mask_ref[...]            # (1, S_C), broadcasts over query rows

    # TODO(synk): for real BERT shapes (head_dim=64) process 2 heads per
    # iteration so Q/K/V slices and output stores span full 128-lane vregs;
    # irrelevant at these toy sizes (H=32 < 128).
    for h in range(n_heads):
        lo = h * head_dim
        qh = q[:, lo:lo + head_dim].astype(jnp.bfloat16)
        kh = k[:, lo:lo + head_dim].astype(jnp.bfloat16)
        vh = v[:, lo:lo + head_dim].astype(jnp.bfloat16)

        # Q @ K^T contracting last dims of both operands (no explicit transpose).
        s = lax.dot_general(qh, kh, (((1,), (1,)), ((), ())),
                            preferred_element_type=jnp.float32)
        s = s + add_mask                              # f32 mask add
        s = s - jnp.max(s, axis=-1, keepdims=True)    # f32 softmax
        p = jnp.exp(s)
        denom = jnp.sum(p, axis=-1, keepdims=True)
        if approx_recip:
            p = p * pl.reciprocal(denom, approx=True)  # EUP slot
        else:
            p = p / denom                              # exact fallback

        # Direct per-head store (no concat, no extra (S_Q, H) buffer).
        out_ref[:, lo:lo + head_dim] = jnp.dot(
            p.astype(jnp.bfloat16), vh,
            preferred_element_type=jnp.float32).astype(out_ref.dtype)


def bert_co_attention(context_states, query_states, attention_mask, params,
                      num_attention_heads, *, approx_recip=True):
    """Forward of BertCoAttention (eval mode).

    context_states: [B, S_C, H] (keys/values), query_states: [B, S_Q, H],
    attention_mask: [B, S_C] with 1 = attend, 0 = pad.
    params: wq/wk/wv stored pre-transposed as [in, out], biases as [1, out].
    """
    B, S_C, H = context_states.shape
    _, S_Q, _ = query_states.shape
    head_dim = H // num_attention_heads
    inv_sqrt_d = 1.0 / math.sqrt(head_dim)

    # ---------------- host-side parameter prep (done once) ----------------
    wq_s = (params["wq"] * inv_sqrt_d).astype(jnp.bfloat16)       # fold 1/sqrt(d)
    bq_s = (params["bq"] * inv_sqrt_d).astype(jnp.float32)
    wkv = jnp.concatenate([params["wk"], params["wv"]], axis=1).astype(jnp.bfloat16)
    bkv = jnp.concatenate([params["bk"], params["bv"]], axis=1).astype(jnp.float32)

    # Per-batch additive key-pad mask, (B, 1, S_C): (1 - m) * -1e4 (matches ref).
    add_mask = ((1.0 - attention_mask.astype(jnp.float32)) * -10000.0
                ).reshape(B, 1, S_C)

    # bf16 activations: halves DMA bytes and feeds the MXU at bf16 peak.
    qry = query_states.astype(jnp.bfloat16)
    ctx = context_states.astype(jnp.bfloat16)

    kernel = partial(_coattention_kernel, hidden=H, n_heads=num_attention_heads,
                     approx_recip=approx_recip)

    flops = (2 * B * S_Q * H * H          # Q projection
             + 2 * B * S_C * H * 2 * H    # fused K|V projection
             + 4 * B * S_Q * S_C * H)     # QK^T + P@V across all heads
    transcendentals = B * num_attention_heads * S_Q * S_C          # exp
    bytes_accessed = (qry.size * 2 + ctx.size * 2 + add_mask.size * 4
                      + wq_s.size * 2 + wkv.size * 2
                      + bq_s.size * 4 + bkv.size * 4
                      + B * S_Q * H * 4)                           # output

    grid_spec = pltpu.PrefetchScalarGridSpec(
        num_scalar_prefetch=0,
        grid=(B,),
        in_specs=[
            pl.BlockSpec((None, S_Q, H), lambda b: (b, 0, 0)),     # query
            pl.BlockSpec((None, S_C, H), lambda b: (b, 0, 0)),     # context
            pl.BlockSpec((None, 1, S_C), lambda b: (b, 0, 0)),     # additive mask
            pl.BlockSpec((H, H), lambda b: (0, 0)),                # Wq (scaled)
            pl.BlockSpec((H, 2 * H), lambda b: (0, 0)),            # Wk|Wv
            pl.BlockSpec((1, H), lambda b: (0, 0)),                # bq (scaled)
            pl.BlockSpec((1, 2 * H), lambda b: (0, 0)),            # bk|bv
        ],
        out_specs=pl.BlockSpec((None, S_Q, H), lambda b: (b, 0, 0)),
    )

    out = pl.pallas_call(
        kernel,
        grid_spec=grid_spec,
        out_shape=jax.ShapeDtypeStruct((B, S_Q, H), jnp.float32),
        compiler_params=pltpu.CompilerParams(
            dimension_semantics=("parallel",),        # megacore / v7x 2nd TC
            vmem_limit_bytes=32 * 1024 * 1024),       # safe on v7x (64 MiB VMEM)
        cost_estimate=pl.CostEstimate(
            flops=flops, transcendentals=transcendentals,
            bytes_accessed=bytes_accessed),
    )(qry, ctx, add_mask, wq_s, wkv, bq_s, bkv)

    return out


def _reference(context_states, query_states, attention_mask, params, num_heads):
    """Plain-JAX reference mirroring the PyTorch forward (f32)."""
    B, S_C, H = context_states.shape
    _, S_Q, _ = query_states.shape
    hd = H // num_heads

    q = query_states @ params["wq"] + params["bq"][0]
    k = context_states @ params["wk"] + params["bk"][0]
    v = context_states @ params["wv"] + params["bv"][0]

    def split(x, s):
        return x.reshape(B, s, num_heads, hd).transpose(0, 2, 1, 3)

    qh, kh, vh = split(q, S_Q), split(k, S_C), split(v, S_C)
    scores = jnp.einsum("bhqd,bhkd->bhqk", qh, kh) / math.sqrt(hd)
    ext_mask = (1.0 - attention_mask[:, None, None, :]) * -10000.0
    scores = scores + ext_mask
    probs = jax.nn.softmax(scores, axis=-1)
    ctx = jnp.einsum("bhqk,bhkd->bhqd", probs, vh)
    return ctx.transpose(0, 2, 1, 3).reshape(B, S_Q, H)


if __name__ == "__main__":
    B, S_Q, S_C, HIDDEN, N_HEADS = 2, 8, 16, 32, 4

    key = jax.random.PRNGKey(0)
    keys = jax.random.split(key, 8)

    context_states = jax.random.normal(keys[0], (B, S_C, HIDDEN), jnp.float32)
    query_states = jax.random.normal(keys[1], (B, S_Q, HIDDEN), jnp.float32)
    # attention_mask over the context (key) positions, 1 = attend, 0 = pad
    attention_mask = (jax.random.uniform(keys[2], (B, S_C)) > 0.25).astype(jnp.float32)
    attention_mask = attention_mask.at[:, 0].set(1.0)  # keep >=1 valid key per row

    scale = 0.02
    params = {
        "wq": scale * jax.random.normal(keys[3], (HIDDEN, HIDDEN), jnp.float32),
        "wk": scale * jax.random.normal(keys[4], (HIDDEN, HIDDEN), jnp.float32),
        "wv": scale * jax.random.normal(keys[5], (HIDDEN, HIDDEN), jnp.float32),
        "bq": scale * jax.random.normal(keys[6], (1, HIDDEN), jnp.float32),
        "bk": scale * jax.random.normal(keys[7], (1, HIDDEN), jnp.float32),
        "bv": jnp.zeros((1, HIDDEN), jnp.float32),
    }

    out = bert_co_attention(context_states, query_states, attention_mask,
                            params, N_HEADS)
    out = jax.block_until_ready(out)

    ref = _reference(context_states, query_states, attention_mask, params, N_HEADS)
    assert out.shape == (B, S_Q, HIDDEN)
    # bf16 matmul operands -> slightly looser tolerance than pure-f32.
    assert jnp.allclose(out, ref, atol=5e-3, rtol=5e-3), "mismatch vs reference"

    print("KERNEL_OK")
</pallas_src>

<mosaic_0001>
module attributes {stable_mosaic.version = 11 : i64} {
  func.func @_coattention_kernel(%arg0: i32, %arg1: memref<1x8x32xbf16, #tpu.memory_space<vmem>>, %arg2: memref<1x16x32xbf16, #tpu.memory_space<vmem>>, %arg3: memref<1x1x16xf32, #tpu.memory_space<vmem>>, %arg4: memref<32x32xbf16, #tpu.memory_space<vmem>>, %arg5: memref<32x64xbf16, #tpu.memory_space<vmem>>, %arg6: memref<1x32xf32, #tpu.memory_space<vmem>>, %arg7: memref<1x64xf32, #tpu.memory_space<vmem>>, %arg8: memref<1x8x32xf32, #tpu.memory_space<vmem>>) attributes {dimension_semantics = [#tpu.dimension_semantics<parallel>], iteration_bounds = array<i64: 2>, scalar_prefetch = 0 : i64, scratch_operands = 0 : i64, tpu.core_type = #tpu.core_type<tc>, window_params = [{transform_indices = @transform_0, window_bounds = array<i64: 1, 8, 32>}, {transform_indices = @transform_1, window_bounds = array<i64: 1, 16, 32>}, {transform_indices = @transform_2, window_bounds = array<i64: 1, 1, 16>}, {pipeline_mode = #tpu.pipeline_mode<synchronous>, transform_indices = @transform_3, window_bounds = array<i64: 32, 32>}, {pipeline_mode = #tpu.pipeline_mode<synchronous>, transform_indices = @transform_4, window_bounds = array<i64: 32, 64>}, {pipeline_mode = #tpu.pipeline_mode<synchronous>, transform_indices = @transform_5, window_bounds = array<i64: 1, 32>}, {pipeline_mode = #tpu.pipeline_mode<synchronous>, transform_indices = @transform_6, window_bounds = array<i64: 1, 64>}, {transform_indices = @transform_7, window_bounds = array<i64: 1, 8, 32>}]} {
    %c0 = arith.constant 0 : index
    %c0_0 = arith.constant 0 : index
    %c0_1 = arith.constant 0 : index
    %0 = vector.load %arg1[%c0, %c0_0, %c0_1] : memref<1x8x32xbf16, #tpu.memory_space<vmem>>, vector<1x8x32xbf16>
    %1 = vector.shape_cast %0 : vector<1x8x32xbf16> to vector<8x32xbf16>
    %c0_2 = arith.constant 0 : index
    %c0_3 = arith.constant 0 : index
    %2 = vector.load %arg4[%c0_2, %c0_3] : memref<32x32xbf16, #tpu.memory_space<vmem>>, vector<32x32xbf16>
    %cst = arith.constant dense<0.000000e+00> : vector<8x32xf32>
    %3 = tpu.matmul %1, %2, %cst {dimension_numbers = #tpu.dot_dimension_numbers<[1], [0], [0], [1], [0, 0, 1, 1], [], []>} : vector<8x32xbf16>, vector<32x32xbf16>, vector<8x32xf32> -> vector<8x32xf32>
    %c0_4 = arith.constant 0 : index
    %c0_5 = arith.constant 0 : index
    %4 = vector.load %arg6[%c0_4, %c0_5] : memref<1x32xf32, #tpu.memory_space<vmem>>, vector<1x32xf32>
    %5 = vector.broadcast %4 : vector<1x32xf32> to vector<8x32xf32>
    %6 = arith.addf %3, %5 : vector<8x32xf32>
    %c0_6 = arith.constant 0 : index
    %c0_7 = arith.constant 0 : index
    %c0_8 = arith.constant 0 : index
    %7 = vector.load %arg2[%c0_6, %c0_7, %c0_8] : memref<1x16x32xbf16, #tpu.memory_space<vmem>>, vector<1x16x32xbf16>
    %8 = vector.shape_cast %7 : vector<1x16x32xbf16> to vector<16x32xbf16>
    %c0_9 = arith.constant 0 : index
    %c0_10 = arith.constant 0 : index
    %9 = vector.load %arg5[%c0_9, %c0_10] : memref<32x64xbf16, #tpu.memory_space<vmem>>, vector<32x64xbf16>
    %cst_11 = arith.constant dense<0.000000e+00> : vector<16x64xf32>
    %10 = tpu.matmul %8, %9, %cst_11 {dimension_numbers = #tpu.dot_dimension_numbers<[1], [0], [0], [1], [0, 0, 1, 1], [], []>} : vector<16x32xbf16>, vector<32x64xbf16>, vector<16x64xf32> -> vector<16x64xf32>
    %c0_12 = arith.constant 0 : index
    %c0_13 = arith.constant 0 : index
    %11 = vector.load %arg7[%c0_12, %c0_13] : memref<1x64xf32, #tpu.memory_space<vmem>>, vector<1x64xf32>
    %12 = vector.broadcast %11 : vector<1x64xf32> to vector<16x64xf32>
    %13 = arith.addf %10, %12 : vector<16x64xf32>
    %14 = vector.extract_strided_slice %13 {offsets = [0, 0], sizes = [16, 32], strides = [1, 1]} : vector<16x64xf32> to vector<16x32xf32>
    %15 = vector.extract_strided_slice %13 {offsets = [0, 32], sizes = [16, 32], strides = [1, 1]} : vector<16x64xf32> to vector<16x32xf32>
    %c0_14 = arith.constant 0 : index
    %c0_15 = arith.constant 0 : index
    %c0_16 = arith.constant 0 : index
    %16 = vector.load %arg3[%c0_14, %c0_15, %c0_16] : memref<1x1x16xf32, #tpu.memory_space<vmem>>, vector<1x1x16xf32>
    %17 = vector.shape_cast %16 : vector<1x1x16xf32> to vector<1x16xf32>
    %18 = vector.extract_strided_slice %6 {offsets = [0, 0], sizes = [8, 8], strides = [1, 1]} : vector<8x32xf32> to vector<8x8xf32>
    %19 = arith.truncf %18 : vector<8x8xf32> to vector<8x8xbf16>
    %20 = vector.extract_strided_slice %14 {offsets = [0, 0], sizes = [16, 8], strides = [1, 1]} : vector<16x32xf32> to vector<16x8xf32>
    %21 = arith.truncf %20 : vector<16x8xf32> to vector<16x8xbf16>
    %22 = vector.extract_strided_slice %15 {offsets = [0, 0], sizes = [16, 8], strides = [1, 1]} : vector<16x32xf32> to vector<16x8xf32>
    %23 = arith.truncf %22 : vector<16x8xf32> to vector<16x8xbf16>
    %cst_17 = arith.constant dense<0.000000e+00> : vector<8x16xf32>
    %24 = tpu.matmul %19, %21, %cst_17 {dimension_numbers = #tpu.dot_dimension_numbers<[1], [1], [0], [0], [0, 0, 1, 0], [], []>} : vector<8x8xbf16>, vector<16x8xbf16>, vector<8x16xf32> -> vector<8x16xf32>
    %25 = vector.broadcast %17 : vector<1x16xf32> to vector<8x16xf32>
    %26 = arith.addf %24, %25 : vector<8x16xf32>
    %cst_18 = arith.constant dense<0xFF800000> : vector<8xf32>
    %27 = vector.multi_reduction <maximumf>, %26, %cst_18 [1] : vector<8x16xf32> to vector<8xf32>
    %28 = vector.shape_cast %27 : vector<8xf32> to vector<8x1xf32>
    %29 = vector.broadcast %28 : vector<8x1xf32> to vector<8x16xf32>
    %30 = arith.subf %26, %29 : vector<8x16xf32>
    %31 = math.exp %30 : vector<8x16xf32>
    %cst_19 = arith.constant dense<0.000000e+00> : vector<8xf32>
    %32 = vector.multi_reduction <add>, %31, %cst_19 [1] : vector<8x16xf32> to vector<8xf32>
    %33 = vector.shape_cast %32 : vector<8xf32> to vector<8x1xf32>
    %34 = tpu.reciprocal %33 {approx = true} : vector<8x1xf32> -> vector<8x1xf32>
    %35 = vector.broadcast %34 : vector<8x1xf32> to vector<8x16xf32>
    %36 = arith.mulf %31, %35 : vector<8x16xf32>
    %37 = arith.truncf %36 : vector<8x16xf32> to vector<8x16xbf16>
    %cst_20 = arith.constant dense<0.000000e+00> : vector<8x8xf32>
    %38 = tpu.matmul %37, %23, %cst_20 {dimension_numbers = #tpu.dot_dimension_numbers<[1], [0], [0], [1], [0, 0, 1, 1], [], []>} : vector<8x16xbf16>, vector<16x8xbf16>, vector<8x8xf32> -> vector<8x8xf32>
    %c0_21 = arith.constant 0 : index
    %c0_22 = arith.constant 0 : index
    %c0_23 = arith.constant 0 : index
    %39 = vector.load %arg8[%c0_21, %c0_22, %c0_23] : memref<1x8x32xf32, #tpu.memory_space<vmem>>, vector<1x8x8xf32>
    %40 = vector.shape_cast %39 : vector<1x8x8xf32> to vector<8x8xf32>
    %41 = vector.shape_cast %38 : vector<8x8xf32> to vector<1x8x8xf32>
    tpu.vector_store %arg8[%c0_21, %c0_22, %c0_23], %41 {strides = array<i32>} : memref<1x8x32xf32, #tpu.memory_space<vmem>>, vector<1x8x8xf32>,
    %42 = vector.extract_strided_slice %6 {offsets = [0, 8], sizes = [8, 8], strides = [1, 1]} : vector<8x32xf32> to vector<8x8xf32>
    %43 = arith.truncf %42 : vector<8x8xf32> to vector<8x8xbf16>
    %44 = vector.extract_strided_slice %14 {offsets = [0, 8], sizes = [16, 8], strides = [1, 1]} : vector<16x32xf32> to vector<16x8xf32>
    %45 = arith.truncf %44 : vector<16x8xf32> to vector<16x8xbf16>
    %46 = vector.extract_strided_slice %15 {offsets = [0, 8], sizes = [16, 8], strides = [1, 1]} : vector<16x32xf32> to vector<16x8xf32>
    %47 = arith.truncf %46 : vector<16x8xf32> to vector<16x8xbf16>
    %cst_24 = arith.constant dense<0.000000e+00> : vector<8x16xf32>
    %48 = tpu.matmul %43, %45, %cst_24 {dimension_numbers = #tpu.dot_dimension_numbers<[1], [1], [0], [0], [0, 0, 1, 0], [], []>} : vector<8x8xbf16>, vector<16x8xbf16>, vector<8x16xf32> -> vector<8x16xf32>
    %49 = vector.broadcast %17 : vector<1x16xf32> to vector<8x16xf32>
    %50 = arith.addf %48, %49 : vector<8x16xf32>
    %cst_25 = arith.constant dense<0xFF800000> : vector<8xf32>
    %51 = vector.multi_reduction <maximumf>, %50, %cst_25 [1] : vector<8x16xf32> to vector<8xf32>
    %52 = vector.shape_cast %51 : vector<8xf32> to vector<8x1xf32>
    %53 = vector.broadcast %52 : vector<8x1xf32> to vector<8x16xf32>
    %54 = arith.subf %50, %53 : vector<8x16xf32>
    %55 = math.exp %54 : vector<8x16xf32>
    %cst_26 = arith.constant dense<0.000000e+00> : vector<8xf32>
    %56 = vector.multi_reduction <add>, %55, %cst_26 [1] : vector<8x16xf32> to vector<8xf32>
    %57 = vector.shape_cast %56 : vector<8xf32> to vector<8x1xf32>
    %58 = tpu.reciprocal %57 {approx = true} : vector<8x1xf32> -> vector<8x1xf32>
    %59 = vector.broadcast %58 : vector<8x1xf32> to vector<8x16xf32>
    %60 = arith.mulf %55, %59 : vector<8x16xf32>
    %61 = arith.truncf %60 : vector<8x16xf32> to vector<8x16xbf16>
    %cst_27 = arith.constant dense<0.000000e+00> : vector<8x8xf32>
    %62 = tpu.matmul %61, %47, %cst_27 {dimension_numbers = #tpu.dot_dimension_numbers<[1], [0], [0], [1], [0, 0, 1, 1], [], []>} : vector<8x16xbf16>, vector<16x8xbf16>, vector<8x8xf32> -> vector<8x8xf32>
    %c0_28 = arith.constant 0 : index
    %c0_29 = arith.constant 0 : index
    %c8 = arith.constant 8 : index
    %63 = vector.load %arg8[%c0_28, %c0_29, %c8] : memref<1x8x32xf32, #tpu.memory_space<vmem>>, vector<1x8x8xf32>
    %64 = vector.shape_cast %63 : vector<1x8x8xf32> to vector<8x8xf32>
    %65 = vector.shape_cast %62 : vector<8x8xf32> to vector<1x8x8xf32>
    tpu.vector_store %arg8[%c0_28, %c0_29, %c8], %65 {strides = array<i32>} : memref<1x8x32xf32, #tpu.memory_space<vmem>>, vector<1x8x8xf32>,
    %66 = vector.extract_strided_slice %6 {offsets = [0, 16], sizes = [8, 8], strides = [1, 1]} : vector<8x32xf32> to vector<8x8xf32>
    %67 = arith.truncf %66 : vector<8x8xf32> to vector<8x8xbf16>
    %68 = vector.extract_strided_slice %14 {offsets = [0, 16], sizes = [16, 8], strides = [1, 1]} : vector<16x32xf32> to vector<16x8xf32>
    %69 = arith.truncf %68 : vector<16x8xf32> to vector<16x8xbf16>
    %70 = vector.extract_strided_slice %15 {offsets = [0, 16], sizes = [16, 8], strides = [1, 1]} : vector<16x32xf32> to vector<16x8xf32>
    %71 = arith.truncf %70 : vector<16x8xf32> to vector<16x8xbf16>
    %cst_30 = arith.constant dense<0.000000e+00> : vector<8x16xf32>
    %72 = tpu.matmul %67, %69, %cst_30 {dimension_numbers = #tpu.dot_dimension_numbers<[1], [1], [0], [0], [0, 0, 1, 0], [], []>} : vector<8x8xbf16>, vector<16x8xbf16>, vector<8x16xf32> -> vector<8x16xf32>
    %73 = vector.broadcast %17 : vector<1x16xf32> to vector<8x16xf32>
    %74 = arith.addf %72, %73 : vector<8x16xf32>
    %cst_31 = arith.constant dense<0xFF800000> : vector<8xf32>
    %75 = vector.multi_reduction <maximumf>, %74, %cst_31 [1] : vector<8x16xf32> to vector<8xf32>
    %76 = vector.shape_cast %75 : vector<8xf32> to vector<8x1xf32>
    %77 = vector.broadcast %76 : vector<8x1xf32> to vector<8x16xf32>
    %78 = arith.subf %74, %77 : vector<8x16xf32>
    %79 = math.exp %78 : vector<8x16xf32>
    %cst_32 = arith.constant dense<0.000000e+00> : vector<8xf32>
    %80 = vector.multi_reduction <add>, %79, %cst_32 [1] : vector<8x16xf32> to vector<8xf32>
    %81 = vector.shape_cast %80 : vector<8xf32> to vector<8x1xf32>
    %82 = tpu.reciprocal %81 {approx = true} : vector<8x1xf32> -> vector<8x1xf32>
    %83 = vector.broadcast %82 : vector<8x1xf32> to vector<8x16xf32>
    %84 = arith.mulf %79, %83 : vector<8x16xf32>
    %85 = arith.truncf %84 : vector<8x16xf32> to vector<8x16xbf16>
    %cst_33 = arith.constant dense<0.000000e+00> : vector<8x8xf32>
    %86 = tpu.matmul %85, %71, %cst_33 {dimension_numbers = #tpu.dot_dimension_numbers<[1], [0], [0], [1], [0, 0, 1, 1], [], []>} : vector<8x16xbf16>, vector<16x8xbf16>, vector<8x8xf32> -> vector<8x8xf32>
    %c0_34 = arith.constant 0 : index
    %c0_35 = arith.constant 0 : index
    %c16 = arith.constant 16 : index
    %87 = vector.load %arg8[%c0_34, %c0_35, %c16] : memref<1x8x32xf32, #tpu.memory_space<vmem>>, vector<1x8x8xf32>
    %88 = vector.shape_cast %87 : vector<1x8x8xf32> to vector<8x8xf32>
    %89 = vector.shape_cast %86 : vector<8x8xf32> to vector<1x8x8xf32>
    tpu.vector_store %arg8[%c0_34, %c0_35, %c16], %89 {strides = array<i32>} : memref<1x8x32xf32, #tpu.memory_space<vmem>>, vector<1x8x8xf32>,
    %90 = vector.extract_strided_slice %6 {offsets = [0, 24], sizes = [8, 8], strides = [1, 1]} : vector<8x32xf32> to vector<8x8xf32>
    %91 = arith.truncf %90 : vector<8x8xf32> to vector<8x8xbf16>
    %92 = vector.extract_strided_slice %14 {offsets = [0, 24], sizes = [16, 8], strides = [1, 1]} : vector<16x32xf32> to vector<16x8xf32>
    %93 = arith.truncf %92 : vector<16x8xf32> to vector<16x8xbf16>
    %94 = vector.extract_strided_slice %15 {offsets = [0, 24], sizes = [16, 8], strides = [1, 1]} : vector<16x32xf32> to vector<16x8xf32>
    %95 = arith.truncf %94 : vector<16x8xf32> to vector<16x8xbf16>
    %cst_36 = arith.constant dense<0.000000e+00> : vector<8x16xf32>
    %96 = tpu.matmul %91, %93, %cst_36 {dimension_numbers = #tpu.dot_dimension_numbers<[1], [1], [0], [0], [0, 0, 1, 0], [], []>} : vector<8x8xbf16>, vector<16x8xbf16>, vector<8x16xf32> -> vector<8x16xf32>
    %97 = vector.broadcast %17 : vector<1x16xf32> to vector<8x16xf32>
    %98 = arith.addf %96, %97 : vector<8x16xf32>
    %cst_37 = arith.constant dense<0xFF800000> : vector<8xf32>
    %99 = vector.multi_reduction <maximumf>, %98, %cst_37 [1] : vector<8x16xf32> to vector<8xf32>
    %100 = vector.shape_cast %99 : vector<8xf32> to vector<8x1xf32>
    %101 = vector.broadcast %100 : vector<8x1xf32> to vector<8x16xf32>
    %102 = arith.subf %98, %101 : vector<8x16xf32>
    %103 = math.exp %102 : vector<8x16xf32>
    %cst_38 = arith.constant dense<0.000000e+00> : vector<8xf32>
    %104 = vector.multi_reduction <add>, %103, %cst_38 [1] : vector<8x16xf32> to vector<8xf32>
    %105 = vector.shape_cast %104 : vector<8xf32> to vector<8x1xf32>
    %106 = tpu.reciprocal %105 {approx = true} : vector<8x1xf32> -> vector<8x1xf32>
    %107 = vector.broadcast %106 : vector<8x1xf32> to vector<8x16xf32>
    %108 = arith.mulf %103, %107 : vector<8x16xf32>
    %109 = arith.truncf %108 : vector<8x16xf32> to vector<8x16xbf16>
    %cst_39 = arith.constant dense<0.000000e+00> : vector<8x8xf32>
    %110 = tpu.matmul %109, %95, %cst_39 {dimension_numbers = #tpu.dot_dimension_numbers<[1], [0], [0], [1], [0, 0, 1, 1], [], []>} : vector<8x16xbf16>, vector<16x8xbf16>, vector<8x8xf32> -> vector<8x8xf32>
    %c0_40 = arith.constant 0 : index
    %c0_41 = arith.constant 0 : index
    %c24 = arith.constant 24 : index
    %111 = vector.load %arg8[%c0_40, %c0_41, %c24] : memref<1x8x32xf32, #tpu.memory_space<vmem>>, vector<1x8x8xf32>
    %112 = vector.shape_cast %111 : vector<1x8x8xf32> to vector<8x8xf32>
    %113 = vector.shape_cast %110 : vector<8x8xf32> to vector<1x8x8xf32>
    tpu.vector_store %arg8[%c0_40, %c0_41, %c24], %113 {strides = array<i32>} : memref<1x8x32xf32, #tpu.memory_space<vmem>>, vector<1x8x8xf32>,
    return
  }
  func.func @transform_0(%arg0: i32) -> (i32, i32, i32) {
    %c0_i32 = arith.constant 0 : i32
    %c0_i32_0 = arith.constant 0 : i32
    %c0_i32_1 = arith.constant 0 : i32
    return %arg0, %c0_i32, %c0_i32_0 : i32, i32, i32
  }
  func.func @transform_1(%arg0: i32) -> (i32, i32, i32) {
    %c0_i32 = arith.constant 0 : i32
    %c0_i32_0 = arith.constant 0 : i32
    %c0_i32_1 = arith.constant 0 : i32
    return %arg0, %c0_i32, %c0_i32_0 : i32, i32, i32
  }
  func.func @transform_2(%arg0: i32) -> (i32, i32, i32) {
    %c0_i32 = arith.constant 0 : i32
    %c0_i32_0 = arith.constant 0 : i32
    %c0_i32_1 = arith.constant 0 : i32
    return %arg0, %c0_i32, %c0_i32_0 : i32, i32, i32
  }
  func.func @transform_3(%arg0: i32) -> (i32, i32) {
    %c0_i32 = arith.constant 0 : i32
    %c0_i32_0 = arith.constant 0 : i32
    %c0_i32_1 = arith.constant 0 : i32
    return %c0_i32, %c0_i32_0 : i32, i32
  }
  func.func @transform_4(%arg0: i32) -> (i32, i32) {
    %c0_i32 = arith.constant 0 : i32
    %c0_i32_0 = arith.constant 0 : i32
    %c0_i32_1 = arith.constant 0 : i32
    return %c0_i32, %c0_i32_0 : i32, i32
  }
  func.func @transform_5(%arg0: i32) -> (i32, i32) {
    %c0_i32 = arith.constant 0 : i32
    %c0_i32_0 = arith.constant 0 : i32
    %c0_i32_1 = arith.constant 0 : i32
    return %c0_i32, %c0_i32_0 : i32, i32
  }
  func.func @transform_6(%arg0: i32) -> (i32, i32) {
    %c0_i32 = arith.constant 0 : i32
    %c0_i32_0 = arith.constant 0 : i32
    %c0_i32_1 = arith.constant 0 : i32
    return %c0_i32, %c0_i32_0 : i32, i32
  }
  func.func @transform_7(%arg0: i32) -> (i32, i32, i32) {
    %c0_i32 = arith.constant 0 : i32
    %c0_i32_0 = arith.constant 0 : i32
    %c0_i32_1 = arith.constant 0 : i32
    return %arg0, %c0_i32, %c0_i32_0 : i32, i32, i32
  }
}

</mosaic_0001>

<llo_original>
// kernel: tpu_custom_call.1
$region0: #{tpu_custom_call.1}
  #allocation0 [shape = 'u32[]', space=smem, size = 0x4, offset = 0x4, fixed_abs, tag = 'smem constant byte address 0x4 - core index']
  #allocation1 [shape = 'u32[144,128]{1,0:T(1,128)}', space=vmem, size = 0x12000, scoped, tag = 'internal scratch']
  %s0 = inlined_call_operand.hbm [shape: bf16[2,8,32], index: 0, kind: input, shape index: {}]
  %s1 = inlined_call_operand.hbm [shape: bf16[2,16,32], index: 1, kind: input, shape index: {}]
  %s2 = inlined_call_operand.vmem [shape: f32[2,1,16], index: 2, kind: input, shape index: {}]
  %s3 = inlined_call_operand.hbm [shape: bf16[32,32], index: 3, kind: input, shape index: {}]
  %s4 = inlined_call_operand.hbm [shape: bf16[32,64], index: 4, kind: input, shape index: {}]
  %s5 = inlined_call_operand.vmem [shape: f32[1,32], index: 5, kind: input, shape index: {}]
  %s6 = inlined_call_operand.vmem [shape: f32[1,64], index: 6, kind: input, shape index: {}]
  %s7 = inlined_call_operand.hbm [shape: f32[2,8,32], index: 7, kind: output, shape index: {}]
  %s8 = sld [smem:[#allocation0]]
  $region77: #{tpu_custom_call.1} parent=0
    _
  %s10 = ssub.s32 1, %s8
  %s11 = scalar_select 0, %s10, %s8
  $region1: #{tpu_custom_call.1} parent=0
    #allocation2 [shape = 'u8[4096]{0}', space=vmem, size = 0x1000, scoped, tag = 'input window, operand 0']
    #allocation3 [shape = 's32[2]{0}', space=sflag, size = 0x8, scoped, tag = 'scoped memory for tpu_custom_call.1']
    #allocation4 [shape = 's32[2]{0}', space=sflag, size = 0x8, scoped, tag = 'scoped memory for tpu_custom_call.1']
    #allocation5 [shape = 'u8[8192]{0}', space=vmem, size = 0x2000, scoped, tag = 'input window, operand 1']
    #allocation6 [shape = 's32[2]{0}', space=sflag, size = 0x8, scoped, tag = 'scoped memory for tpu_custom_call.1']
    #allocation7 [shape = 'u8[8192]{0}', space=vmem, size = 0x2000, scoped, tag = 'input window, operand 3, single buffered']
    #allocation8 [shape = 'u8[8192]{0}', space=vmem, size = 0x2000, scoped, tag = 'input window, operand 4, single buffered']
    #allocation9 [shape = 's32[1]{0}', space=sflag, size = 0x4, scoped, tag = 'scoped memory for tpu_custom_call.1']
    #allocation10 [shape = 'u8[8192]{0}', space=vmem, size = 0x2000, scoped, tag = 'output window, operand 0']
    %12 = vsyncpa [#allocation3], 0
    %s13 = scalar_lea.sflag [#allocation3], 1
    %14 = vsyncpa %s13, 0
    %15 = vsyncpa [#allocation6], 0
    %s16 = scalar_lea.sflag [#allocation6], 1
    %17 = vsyncpa %s16, 0
    %18 = vsyncpa [#allocation9], 0
    %19 = vsyncpa [#allocation4], 0
    %s20 = scalar_lea.sflag [#allocation4], 1
    %21 = vsyncpa %s20, 0
    loop: start=0, step=1, limit=4
    $region2: #{tpu_custom_call.1} parent=1 // loop_pre_header
      _
    $region3: #{tpu_custom_call.1} parent=1 // loop_header
      %s23 = sphi 0, %s27
      %p24 = scmp.ge.s32.totalorder %s23, 4
      %s33 = sphi 0, %s35
      %s36 = sphi 0, %s33
      %s37 = sphi 0, %s36
      %s53 = sphi 0, %s37
      %s59 = sphi 0, %s61
      %s62 = sphi 0, %s59
      %s63 = sphi 0, %s62
      %s79 = sphi 0, %s63
      %s85 = sphi 0, %s87
      %s88 = sphi 0, %s85
      %s89 = sphi 0, %s88
      %s105 = sphi 0, %s89
      %s109 = sphi 0, %s109
      %s111 = sphi 0, %s109
      %s112 = sphi 0, %s111
      %s126 = sphi 0, %s112
      %s130 = sphi 0, %s130
      %s132 = sphi 0, %s130
      %s133 = sphi 0, %s132
      %s147 = sphi 0, %s133
      %s151 = sphi 0, %s151
      %s153 = sphi 0, %s151
      %s154 = sphi 0, %s153
      %s168 = sphi 0, %s154
      %s172 = sphi 0, %s172
      %s174 = sphi 0, %s172
      %s175 = sphi 0, %s174
      %s189 = sphi 0, %s175
      %s195 = sphi 0, %s197
      %s198 = sphi 0, %s195
      %s199 = sphi 0, %s198
      %s215 = sphi 0, %s199
    $region4: #{tpu_custom_call.1} parent=1 // loop_header_branch
      %26 = sbr.rel (%p24) target = $region8
    $region5: #{tpu_custom_call.1} parent=1 // loop_body
      %s28 = ssub.s32 %s23, 1
      %s29 = ssub.s32 %s23, 2
      %s30 = sadd.s32 %s23, 1
      %s31 = ssub.s32 %s23, %s30
      %p32 = scmp.eq.s32.totalorder %s31, 0
      %s34 = sadd.s32 %s33, 1
      %s35 = scalar_select %p32, %s33, %s34
      %p38 = pneg %p32
      %p39 = scmp.eq.s32.totalorder %s23, 1
      %p40 = por %p38, %p39
      %p41 = scmp.ne.s32.totalorder %s33, %s36
      %p42 = scmp.eq.s32.totalorder %s23, 0
      %p43 = por %p41, %p42
      %p44 = scmp.ne.s32.totalorder %s33, %s36
      %p45 = scmp.eq.s32.totalorder %s28, 1
      %p46 = por %p44, %p45
      %p47 = scmp.ne.s32.totalorder %s36, %s37
      %p48 = scmp.eq.s32.totalorder %s28, 0
      %p49 = por %p47, %p48
      %p50 = scmp.ne.s32.totalorder %s36, %s37
      %p51 = scmp.eq.s32.totalorder %s29, 1
      %p52 = por %p50, %p51
      %p54 = scmp.ne.s32.totalorder %s37, %s53
      %p55 = scmp.eq.s32.totalorder %s29, 0
      %p56 = por %p54, %p55
      %s57 = ssub.s32 %s23, %s30
      %p58 = scmp.eq.s32.totalorder %s57, 0
      %s60 = sadd.s32 %s59, 1
      %s61 = scalar_select %p58, %s59, %s60
      %p64 = pneg %p58
      %p65 = scmp.eq.s32.totalorder %s23, 1
      %p66 = por %p64, %p65
      %p67 = scmp.ne.s32.totalorder %s59, %s62
      %p68 = scmp.eq.s32.totalorder %s23, 0
      %p69 = por %p67, %p68
      %p70 = scmp.ne.s32.totalorder %s59, %s62
      %p71 = scmp.eq.s32.totalorder %s28, 1
      %p72 = por %p70, %p71
      %p73 = scmp.ne.s32.totalorder %s62, %s63
      %p74 = scmp.eq.s32.totalorder %s28, 0
      %p75 = por %p73, %p74
      %p76 = scmp.ne.s32.totalorder %s62, %s63
      %p77 = scmp.eq.s32.totalorder %s29, 1
      %p78 = por %p76, %p77
      %p80 = scmp.ne.s32.totalorder %s63, %s79
      %p81 = scmp.eq.s32.totalorder %s29, 0
      %p82 = por %p80, %p81
      %s83 = ssub.s32 %s23, %s30
      %p84 = scmp.eq.s32.totalorder %s83, 0
      %s86 = sadd.s32 %s85, 1
      %s87 = scalar_select %p84, %s85, %s86
      %p90 = pneg %p84
      %p91 = scmp.eq.s32.totalorder %s23, 1
      %p92 = por %p90, %p91
      %p93 = scmp.ne.s32.totalorder %s85, %s88
      %p94 = scmp.eq.s32.totalorder %s23, 0
      %p95 = por %p93, %p94
      %p96 = scmp.ne.s32.totalorder %s85, %s88
      %p97 = scmp.eq.s32.totalorder %s28, 1
      %p98 = por %p96, %p97
      %p99 = scmp.ne.s32.totalorder %s88, %s89
      %p100 = scmp.eq.s32.totalorder %s28, 0
      %p101 = por %p99, %p100
      %p102 = scmp.ne.s32.totalorder %s88, %s89
      %p103 = scmp.eq.s32.totalorder %s29, 1
      %p104 = por %p102, %p103
      %p106 = scmp.ne.s32.totalorder %s89, %s105
      %p107 = scmp.eq.s32.totalorder %s29, 0
      %p108 = por %p106, %p107
      %s110 = sadd.s32 %s109, 1
      %p113 = scmp.eq.s32.totalorder %s23, 1
      %p114 = scmp.ne.s32.totalorder %s109, %s111
      %p115 = scmp.eq.s32.totalorder %s23, 0
      %p116 = por %p114, %p115
      %p117 = scmp.ne.s32.totalorder %s109, %s111
      %p118 = scmp.eq.s32.totalorder %s28, 1
      %p119 = por %p117, %p118
      %p120 = scmp.ne.s32.totalorder %s111, %s112
      %p121 = scmp.eq.s32.totalorder %s28, 0
      %p122 = por %p120, %p121
      %p123 = scmp.ne.s32.totalorder %s111, %s112
      %p124 = scmp.eq.s32.totalorder %s29, 1
      %p125 = por %p123, %p124
      %p127 = scmp.ne.s32.totalorder %s112, %s126
      %p128 = scmp.eq.s32.totalorder %s29, 0
      %p129 = por %p127, %p128
      %s131 = sadd.s32 %s130, 1
      %p134 = scmp.eq.s32.totalorder %s23, 1
      %p135 = scmp.ne.s32.totalorder %s130, %s132
      %p136 = scmp.eq.s32.totalorder %s23, 0
      %p137 = por %p135, %p136
      %p138 = scmp.ne.s32.totalorder %s130, %s132
      %p139 = scmp.eq.s32.totalorder %s28, 1
      %p140 = por %p138, %p139
      %p141 = scmp.ne.s32.totalorder %s132, %s133
      %p142 = scmp.eq.s32.totalorder %s28, 0
      %p143 = por %p141, %p142
      %p144 = scmp.ne.s32.totalorder %s132, %s133
      %p145 = scmp.eq.s32.totalorder %s29, 1
      %p146 = por %p144, %p145
      %p148 = scmp.ne.s32.totalorder %s133, %s147
      %p149 = scmp.eq.s32.totalorder %s29, 0
      %p150 = por %p148, %p149
      %s152 = sadd.s32 %s151, 1
      %p155 = scmp.eq.s32.totalorder %s23, 1
      %p156 = scmp.ne.s32.totalorder %s151, %s153
      %p157 = scmp.eq.s32.totalorder %s23, 0
      %p158 = por %p156, %p157
      %p159 = scmp.ne.s32.totalorder %s151, %s153
      %p160 = scmp.eq.s32.totalorder %s28, 1
      %p161 = por %p159, %p160
      %p162 = scmp.ne.s32.totalorder %s153, %s154
      %p163 = scmp.eq.s32.totalorder %s28, 0
      %p164 = por %p162, %p163
      %p165 = scmp.ne.s32.totalorder %s153, %s154
      %p166 = scmp.eq.s32.totalorder %s29, 1
      %p167 = por %p165, %p166
      %p169 = scmp.ne.s32.totalorder %s154, %s168
      %p170 = scmp.eq.s32.totalorder %s29, 0
      %p171 = por %p169, %p170
      %s173 = sadd.s32 %s172, 1
      %p176 = scmp.eq.s32.totalorder %s23, 1
      %p177 = scmp.ne.s32.totalorder %s172, %s174
      %p178 = scmp.eq.s32.totalorder %s23, 0
      %p179 = por %p177, %p178
      %p180 = scmp.ne.s32.totalorder %s172, %s174
      %p181 = scmp.eq.s32.totalorder %s28, 1
      %p182 = por %p180, %p181
      %p183 = scmp.ne.s32.totalorder %s174, %s175
      %p184 = scmp.eq.s32.totalorder %s28, 0
      %p185 = por %p183, %p184
      %p186 = scmp.ne.s32.totalorder %s174, %s175
      %p187 = scmp.eq.s32.totalorder %s29, 1
      %p188 = por %p186, %p187
      %p190 = scmp.ne.s32.totalorder %s175, %s189
      %p191 = scmp.eq.s32.totalorder %s29, 0
      %p192 = por %p190, %p191
      %s193 = ssub.s32 %s23, %s30
      %p194 = scmp.eq.s32.totalorder %s193, 0
      %s196 = sadd.s32 %s195, 1
      %s197 = scalar_select %p194, %s195, %s196
      %p200 = pneg %p194
      %p201 = scmp.eq.s32.totalorder %s23, 1
      %p202 = por %p200, %p201
      %p203 = scmp.ne.s32.totalorder %s195, %s198
      %p204 = scmp.eq.s32.totalorder %s23, 0
      %p205 = por %p203, %p204
      %p206 = scmp.ne.s32.totalorder %s195, %s198
      %p207 = scmp.eq.s32.totalorder %s28, 1
      %p208 = por %p206, %p207
      %p209 = scmp.ne.s32.totalorder %s198, %s199
      %p210 = scmp.eq.s32.totalorder %s28, 0
      %p211 = por %p209, %p210
      %p212 = scmp.ne.s32.totalorder %s198, %s199
      %p213 = scmp.eq.s32.totalorder %s29, 1
      %p214 = por %p212, %p213
      %p216 = scmp.ne.s32.totalorder %s199, %s215
      %p217 = scmp.eq.s32.totalorder %s29, 0
      %p218 = por %p216, %p217
      %p219 = scmp.le.s32.totalorder 1, %s23
      %p220 = scmp.lt.s32.totalorder %s23, 3
      %p221 = pnand %p219, %p220
      %p222 = pneg %p221
      // Predicated region
      $region9: #{tpu_custom_call.1} parent=5 // pred_check
        _
      $region10: #{tpu_custom_call.1} parent=5 // pred_check_branch
        %224 = sbr.rel (%p221) target = $region12
      $region11: #{tpu_custom_call.1} parent=5 // pred_region
        %s225 = ssub.s32 %s23, 1
        // Predicated region
        $region13: #{tpu_custom_call.1} parent=11 // pred_check
          %p226 = pneg %p122
        $region14: #{tpu_custom_call.1} parent=11 // pred_check_branch
          %228 = sbr.rel (%p226) target = $region16
        $region15: #{tpu_custom_call.1} parent=11 // pred_region
          %s230 = ssub.s32 256, 256
          %231 = vsyncadd [#allocation6], %s230
          %s232 = sshll.u32 [#allocation7], 4
          %s233 = int_to_ptr.vmem [resolvable:$true] %s232
          %238 = dma.hbm_to_vmem [thread:$0]  %s3, 256, %s233, [#allocation6], 64, 64, 4
        $region16: #{tpu_custom_call.1} parent=11 // pred_fallthru
          _
        // Predicated region
        $region17: #{tpu_custom_call.1} parent=11 // pred_check
          %p239 = pneg %p143
        $region18: #{tpu_custom_call.1} parent=11 // pred_check_branch
          %241 = sbr.rel (%p239) target = $region20
        $region19: #{tpu_custom_call.1} parent=11 // pred_region
          %s243 = ssub.s32 256, 256
          %244 = vsyncadd [#allocation9], %s243
          %s245 = sshll.u32 [#allocation8], 4
          %s246 = int_to_ptr.vmem [resolvable:$true] %s245
          %251 = dma.hbm_to_vmem [thread:$0]  %s4, 256, %s246, [#allocation9], 64, 64, 4
        $region20: #{tpu_custom_call.1} parent=11 // pred_fallthru
          _
        // Predicated region
        $region21: #{tpu_custom_call.1} parent=11 // pred_check
          %p252 = pneg %p164
        $region22: #{tpu_custom_call.1} parent=11 // pred_check_branch
          %254 = sbr.rel (%p252) target = $region24
        $region23: #{tpu_custom_call.1} parent=11 // pred_region
          _
        $region24: #{tpu_custom_call.1} parent=11 // pred_fallthru
          _
        // Predicated region
        $region25: #{tpu_custom_call.1} parent=11 // pred_check
          %p255 = pneg %p185
        $region26: #{tpu_custom_call.1} parent=11 // pred_check_branch
          %257 = sbr.rel (%p255) target = $region28
        $region27: #{tpu_custom_call.1} parent=11 // pred_region
          _
        $region28: #{tpu_custom_call.1} parent=11 // pred_fallthru
          _
      $region12: #{tpu_custom_call.1} parent=5 // pred_fallthru
        _
      %p258 = scmp.lt.s32.totalorder %s23, 2
      // Predicated region
      $region29: #{tpu_custom_call.1} parent=5 // pred_check
        %p259 = pneg %p258
      $region30: #{tpu_custom_call.1} parent=5 // pred_check_branch
        %261 = sbr.rel (%p259) target = $region32
      $region31: #{tpu_custom_call.1} parent=5 // pred_region
        // Predicated region
        $region33: #{tpu_custom_call.1} parent=31 // pred_check
          %p262 = pneg %p43
        $region34: #{tpu_custom_call.1} parent=31 // pred_check_branch
          %264 = sbr.rel (%p262) target = $region36
        $region35: #{tpu_custom_call.1} parent=31 // pred_region
          %s265 = sand.u32 %s33, 1
          %s266 = scalar_lea.sflag [#allocation3], %s265
          %s267 = sand.u32 %s33, 1
          %s268 = smul.addr %s267, 4
          %s269 = scalar_lea.vmem [#allocation2], %s268
          %s271 = ssub.s32 64, 64
          %272 = vsyncadd %s266, %s271
          %s273 = smul.addr %s23, 64
          %s274 = scalar_lea.hbm %s0, %s273
          %s276 = sshll.u32 %s269, 4
          %s277 = int_to_ptr.vmem [resolvable:$true] %s276
          %279 = dma.hbm_to_vmem [thread:$0]  %s274, 64, %s277, %s266
        $region36: #{tpu_custom_call.1} parent=31 // pred_fallthru
          _
        // Predicated region
        $region37: #{tpu_custom_call.1} parent=31 // pred_check
          %p280 = pneg %p69
        $region38: #{tpu_custom_call.1} parent=31 // pred_check_branch
          %282 = sbr.rel (%p280) target = $region40
        $region39: #{tpu_custom_call.1} parent=31 // pred_region
          %s283 = sand.u32 %s23, 1
          %s284 = scalar_lea.sflag [#allocation6], %s283
          %s285 = sand.u32 %s59, 1
          %s286 = smul.addr %s285, 8
          %s287 = scalar_lea.vmem [#allocation5], %s286
          %s289 = ssub.s32 128, 128
          %290 = vsyncadd %s284, %s289
          %s291 = smul.addr %s23, 2
          %s292 = smul.addr %s291, 64
          %s293 = scalar_lea.hbm %s1, %s292
          %s294 = sshll.u32 %s287, 4
          %s295 = int_to_ptr.vmem [resolvable:$true] %s294
          %300 = dma.hbm_to_vmem [thread:$0]  %s293, 128, %s295, %s284, 64, 64, 4
        $region40: #{tpu_custom_call.1} parent=31 // pred_fallthru
          _
        // Predicated region
        $region41: #{tpu_custom_call.1} parent=31 // pred_check
          %p301 = pneg %p95
        $region42: #{tpu_custom_call.1} parent=31 // pred_check_branch
          %303 = sbr.rel (%p301) target = $region44
        $region43: #{tpu_custom_call.1} parent=31 // pred_region
          %p304 = scmp.lt.s32.totalorder %s23, 1
          %s305 = scalar_select %p304, %s23, 1
          %s306 = scalar_lea.vmem %s2, %s305
        $region44: #{tpu_custom_call.1} parent=31 // pred_fallthru
          _
      $region32: #{tpu_custom_call.1} parent=5 // pred_fallthru
        _
      %p307 = scmp.le.s32.totalorder 1, %s23
      %p308 = scmp.lt.s32.totalorder %s23, 3
      %p309 = pnand %p307, %p308
      %p310 = pneg %p309
      // Predicated region
      $region45: #{tpu_custom_call.1} parent=5 // pred_check
        _
      $region46: #{tpu_custom_call.1} parent=5 // pred_check_branch
        %312 = sbr.rel (%p309) target = $region48
      $region47: #{tpu_custom_call.1} parent=5 // pred_region
        %s313 = ssub.s32 %s23, 1
        %s314 = sand.u32 %s36, 1
        %s315 = scalar_lea.sflag [#allocation3], %s314
        %s316 = sand.u32 %s36, 1
        %s317 = smul.addr %s316, 4
        %s318 = scalar_lea.vmem [#allocation2], %s317
        // Predicated region
        $region49: #{tpu_custom_call.1} parent=47 // pred_check
          %p319 = pneg %p49
        $region50: #{tpu_custom_call.1} parent=47 // pred_check_branch
          %321 = sbr.rel (%p319) target = $region52
        $region51: #{tpu_custom_call.1} parent=47 // pred_region
          %322 = dma.done %s315, 64
        $region52: #{tpu_custom_call.1} parent=47 // pred_fallthru
          _
        %s323 = sand.u32 %s28, 1
        %s324 = scalar_lea.sflag [#allocation6], %s323
        %s325 = sand.u32 %s62, 1
        %s326 = smul.addr %s325, 8
        %s327 = scalar_lea.vmem [#allocation5], %s326
        // Predicated region
        $region53: #{tpu_custom_call.1} parent=47 // pred_check
          %p328 = pneg %p75
        $region54: #{tpu_custom_call.1} parent=47 // pred_check_branch
          %330 = sbr.rel (%p328) target = $region56
        $region55: #{tpu_custom_call.1} parent=47 // pred_region
          %331 = dma.done %s324, 128
        $region56: #{tpu_custom_call.1} parent=47 // pred_fallthru
          _
        // Predicated region
        $region57: #{tpu_custom_call.1} parent=47 // pred_check
          %p332 = pneg %p122
        $region58: #{tpu_custom_call.1} parent=47 // pred_check_branch
          %334 = sbr.rel (%p332) target = $region60
        $region59: #{tpu_custom_call.1} parent=47 // pred_region
          %335 = dma.done [#allocation6], 256
        $region60: #{tpu_custom_call.1} parent=47 // pred_fallthru
          _
        // Predicated region
        $region61: #{tpu_custom_call.1} parent=47 // pred_check
          %p336 = pneg %p143
        $region62: #{tpu_custom_call.1} parent=47 // pred_check_branch
          %338 = sbr.rel (%p336) target = $region64
        $region63: #{tpu_custom_call.1} parent=47 // pred_region
          %339 = dma.done [#allocation9], 256
        $region64: #{tpu_custom_call.1} parent=47 // pred_fallthru
          _
        %s340 = sand.u32 %s36, 1
        %s341 = scalar_lea.sflag [#allocation3], %s340
        %s342 = sand.u32 %s36, 1
        %s343 = smul.addr %s342, 4
        %s344 = scalar_lea.vmem [#allocation2], %s343
        %p345 = pneg %p49
        %p346 = pneg %p46
        %s347 = sand.u32 %s28, 1
        %s348 = scalar_lea.sflag [#allocation6], %s347
        %s349 = sand.u32 %s62, 1
        %s350 = smul.addr %s349, 8
        %s351 = scalar_lea.vmem [#allocation5], %s350
        %p352 = pneg %p75
        %p353 = pneg %p72
        %p354 = scmp.lt.s32.totalorder %s28, 1
        %s355 = scalar_select %p354, %s28, 1
        %s356 = scalar_lea.vmem %s2, %s355
        %p357 = pneg %p101
        %p358 = pneg %p98
        %p359 = pneg %p122
        %p360 = pneg %p119
        %p361 = pneg %p143
        %p362 = pneg %p140
        %p363 = pneg %p164
        %p364 = pneg %p161
        %p365 = pneg %p185
        %p366 = pneg %p182
        %p367 = pneg %p211
        %p368 = pneg %p208
        %s369 = sand.u32 %s198, 1
        %s370 = scalar_lea.sflag [#allocation4], %s369
        %s371 = sand.u32 %s198, 1
        %s372 = smul.addr %s371, 8
        %s373 = scalar_lea.vmem [#allocation10], %s372
        %p374 = scmp.lt.s32.totalorder %s28, 1
        %s375 = scalar_select %p374, %s28, 1
        %s376 = scalar_lea.vmem %s2, %s375
        %v378 = vld [vmem:[%s318] sm:$0xf]
        %v379 = vld [vmem:[#allocation7] sm:$0xf]
        %v380 = vld [vmem:[#allocation7 + $0x4] sm:$0xf]
        %v381 = vld [vmem:[#allocation7 + $0x8] sm:$0xf]
        %v382 = vld [vmem:[#allocation7 + $0xc] sm:$0xf]
        %v383 = vld [vmem:[%s5] sm:$0x1]
        %v385 = vlaneseq
        %v386 = vshrl.u32 %v385, 7
        %v387 = vsub.s32 0, %v386
        %v388 = vrot.slane %v383, %v387
        %v394 = vunpack.c.l.b16 %v379
        %v395 = vunpack.c.l.b16 %v380
        %v396 = vunpack.c.l.b16 %v381
        %v397 = vunpack.c.l.b16 %v382
        %v398 = vpack.c.b16 %v395, %v394
        %v399 = vpack.c.b16 %v397, %v396
        %vm402 = vcmask 261120
        %v404 = vsel %vm402, %v378, 0
        %406 = vmatprep.subr.bf16.mxu0 0
        %407 = vmatpush1.bf16.msra.mxu0 %v398
        %408 = vmatprep.subr.bf16.mxu0 0
        %409 = vmatpush1.bf16.msra.mxu0 %v399
        %410 = vmatprep.subr.bf16.mxu0 0
        %411 = vmatpush1.bf16.msra.mxu0 0
        %412 = vmatprep.subr.bf16.mxu0 0
        %413 = vmatpush1.bf16.msra.mxu0 0
        %414 = vmatprep.subr.bf16.mxu0 0
        %415 = vmatpush1.bf16.msra.mxu0 0
        %416 = vmatprep.subr.bf16.mxu0 0
        %417 = vmatpush1.bf16.msra.mxu0 0
        %418 = vmatprep.subr.bf16.mxu0 0
        %419 = vmatpush1.bf16.msra.mxu0 0
        %420 = vmatprep.subr.bf16.mxu0 0
        %421 = vmatpush1.bf16.msra.mxu0 0
        %422 = vmatprep.subr.bf16.mxu0 0
        %423 = vmatpush1.bf16.msra.mxu0 0
        %424 = vmatprep.subr.bf16.mxu0 0
        %425 = vmatpush1.bf16.msra.mxu0 0
        %426 = vmatprep.subr.bf16.mxu0 0
        %427 = vmatpush1.bf16.msra.mxu0 0
        %428 = vmatprep.subr.bf16.mxu0 0
        %429 = vmatpush1.bf16.msra.mxu0 0
        %430 = vmatprep.subr.bf16.mxu0 0
        %431 = vmatpush1.bf16.msra.mxu0 0
        %432 = vmatprep.subr.bf16.mxu0 0
        %433 = vmatpush1.bf16.msra.mxu0 0
        %434 = vmatprep.subr.bf16.mxu0 0
        %435 = vmatpush1.bf16.msra.mxu0 0
        %436 = vmatprep.subr.bf16.mxu0 0
        %437 = vmatpush1.bf16.msra.mxu0 0
        %438 = vmatprep.mubr.bf16.mxu0 0
        %439 = vmatmul.mubr.bf16.gmra.mrb[0].mxu0 %v404
        %v440 = vpop.f32.mrb[0].mxu0
        %v441 = vadd.f32 %v388, %v440
        %v442 = vpop.f32.mrb[0].mxu0
        %v443 = vpop.f32.mrb[0].mxu0
        %v444 = vpop.f32.mrb[0].mxu0
        %445 = vdwg.mxu0
        %v446 = vld [vmem:[%s327] sm:$0xf]
        %v447 = vld [vmem:[%s327 + $0x4] sm:$0xf]
        %v448 = vld [vmem:[#allocation8] sm:$0xf]
        %v449 = vld [vmem:[#allocation8 + $0x4] sm:$0xf]
        %v450 = vld [vmem:[#allocation8 + $0x8] sm:$0xf]
        %v451 = vld [vmem:[#allocation8 + $0xc] sm:$0xf]
        %v452 = vld [vmem:[%s6] sm:$0x1]
        %v454 = vlaneseq
        %v455 = vshrl.u32 %v454, 7
        %v456 = vsub.s32 0, %v455
        %v457 = vrot.slane %v452, %v456
        %v461 = vunpack.c.l.b16 %v446
        %v462 = vunpack.c.l.b16 %v447
        %v463 = vpack.c.b16 %v462, %v461
        %v468 = vunpack.c.l.b16 %v448
        %v469 = vunpack.c.l.b16 %v449
        %v470 = vunpack.c.l.b16 %v450
        %v471 = vunpack.c.l.b16 %v451
        %v472 = vpack.c.b16 %v469, %v468
        %v473 = vpack.c.b16 %v471, %v470
        %v477 = vsel %vm402, %v463, 0
        %479 = vmatprep.subr.bf16.mxu0 0
        %480 = vmatpush1.bf16.msra.mxu0 %v472
        %481 = vmatprep.subr.bf16.mxu0 0
        %482 = vmatpush1.bf16.msra.mxu0 %v473
        %483 = vmatprep.subr.bf16.mxu0 0
        %484 = vmatpush1.bf16.msra.mxu0 0
        %485 = vmatprep.subr.bf16.mxu0 0
        %486 = vmatpush1.bf16.msra.mxu0 0
        %487 = vmatprep.subr.bf16.mxu0 0
        %488 = vmatpush1.bf16.msra.mxu0 0
        %489 = vmatprep.subr.bf16.mxu0 0
        %490 = vmatpush1.bf16.msra.mxu0 0
        %491 = vmatprep.subr.bf16.mxu0 0
        %492 = vmatpush1.bf16.msra.mxu0 0
        %493 = vmatprep.subr.bf16.mxu0 0
        %494 = vmatpush1.bf16.msra.mxu0 0
        %495 = vmatprep.subr.bf16.mxu0 0
        %496 = vmatpush1.bf16.msra.mxu0 0
        %497 = vmatprep.subr.bf16.mxu0 0
        %498 = vmatpush1.bf16.msra.mxu0 0
        %499 = vmatprep.subr.bf16.mxu0 0
        %500 = vmatpush1.bf16.msra.mxu0 0
        %501 = vmatprep.subr.bf16.mxu0 0
        %502 = vmatpush1.bf16.msra.mxu0 0
        %503 = vmatprep.subr.bf16.mxu0 0
        %504 = vmatpush1.bf16.msra.mxu0 0
        %505 = vmatprep.subr.bf16.mxu0 0
        %506 = vmatpush1.bf16.msra.mxu0 0
        %507 = vmatprep.subr.bf16.mxu0 0
        %508 = vmatpush1.bf16.msra.mxu0 0
        %509 = vmatprep.subr.bf16.mxu0 0
        %510 = vmatpush1.bf16.msra.mxu0 0
        %511 = vmatprep.mubr.bf16.mxu0 0
        %512 = vmatmul.mubr.bf16.gmra.mrb[0].mxu0 %v477
        %v513 = vpop.f32.mrb[0].mxu0
        %v514 = vadd.f32 %v457, %v513
        %v515 = vpop.f32.mrb[0].mxu0
        %v516 = vpop.f32.mrb[0].mxu0
        %v517 = vadd.f32 %v457, %v516
        %v518 = vpop.f32.mrb[0].mxu0
        %519 = vdwg.mxu0
        %v520 = vld [vmem:[%s376] sm:$0x1]
        %v521 = vpack.c.bf16 %v441, %v441
        %v522 = vpack.c.bf16 %v517, %v514
        %v524 = vlaneseq
        %v525 = vshrl.u32 %v524, 7
        %v526 = vsub.s32 0, %v525
        %v527 = vrot.slane %v520, %v526
        %vm529 = vcmask 64512
        %v531 = vsel %vm529, %v521, 0
        %v534 = vsel %vm529, %v522, 0
        %536 = vmatprep.subr.bf16.mxu0 0
        %537 = vmatpush1.bf16.xpose.msra.mxu0 %v534
        %538 = vmatprep.subr.bf16.mxu0 0
        %539 = vmatpush1.bf16.xpose.msra.mxu0 0
        %540 = vmatprep.subr.bf16.mxu0 0
        %541 = vmatpush1.bf16.xpose.msra.mxu0 0
        %542 = vmatprep.subr.bf16.mxu0 0
        %543 = vmatpush1.bf16.xpose.msra.mxu0 0
        %544 = vmatprep.subr.bf16.mxu0 0
        %545 = vmatpush1.bf16.xpose.msra.mxu0 0
        %546 = vmatprep.subr.bf16.mxu0 0
        %547 = vmatpush1.bf16.xpose.msra.mxu0 0
        %548 = vmatprep.subr.bf16.mxu0 0
        %549 = vmatpush1.bf16.xpose.msra.mxu0 0
        %550 = vmatprep.subr.bf16.mxu0 0
        %551 = vmatpush1.bf16.xpose.msra.mxu0 0
        %552 = vmatprep.subr.bf16.mxu0 0
        %553 = vmatpush1.bf16.xpose.msra.mxu0 0
        %554 = vmatprep.subr.bf16.mxu0 0
        %555 = vmatpush1.bf16.xpose.msra.mxu0 0
        %556 = vmatprep.subr.bf16.mxu0 0
        %557 = vmatpush1.bf16.xpose.msra.mxu0 0
        %558 = vmatprep.subr.bf16.mxu0 0
        %559 = vmatpush1.bf16.xpose.msra.mxu0 0
        %560 = vmatprep.subr.bf16.mxu0 0
        %561 = vmatpush1.bf16.xpose.msra.mxu0 0
        %562 = vmatprep.subr.bf16.mxu0 0
        %563 = vmatpush1.bf16.xpose.msra.mxu0 0
        %564 = vmatprep.subr.bf16.mxu0 0
        %565 = vmatpush1.bf16.xpose.msra.mxu0 0
        %566 = vmatprep.subr.bf16.mxu0 0
        %567 = vmatpush1.bf16.xpose.msra.mxu0 0
        %568 = vmatprep.mubr.bf16.mxu0 0
        %569 = vmatmul.mubr.bf16.gmra.mrb[0].mxu0 %v531
        %v570 = vpop.f32.mrb[0].mxu0
        %v571 = vadd.f32 %v527, %v570
        %v572 = vpop.f32.mrb[0].mxu0
        %v573 = vpop.f32.mrb[0].mxu0
        %v574 = vpop.f32.mrb[0].mxu0
        %575 = vdwg.mxu0
        %vm576 = vcmask 130048
        %v577 = vsel %vm576, %v571, -inf
        %578 = vmax.xlane.f32.xlu0 %v577
        %v579 = vpop.xlane.xlu0 %578
        %v580 = vsub.f32 %v571, %v579
        %v581 = vmul.f32 %v580, 1.442695
        %v582 = vpow.pop %v581
        %v583 = vsel %vm576, %v582, 0.0
        %584 = vadd.xlane.f32.xlu0 %v583
        %v585 = vpop.xlane.xlu0 %584
        %v586 = vrcp.pop %v585
        %v587 = vmul.f32 %v582, %v586
        %v588 = vpack.c.bf16 %v587, %v587
        %590 = vrot.lane.b32.xlu0 %v522, 96
        %v591 = vpop.permute.xlu0 %590
        %v594 = vsel %vm576, %v588, 0
        %596 = vmatprep.subr.bf16.mxu0 0
        %597 = vmatpush1.bf16.msra.mxu0 %v591
        %598 = vmatprep.subr.bf16.mxu0 0
        %599 = vmatpush1.bf16.msra.mxu0 0
        %600 = vmatprep.subr.bf16.mxu0 0
        %601 = vmatpush1.bf16.msra.mxu0 0
        %602 = vmatprep.subr.bf16.mxu0 0
        %603 = vmatpush1.bf16.msra.mxu0 0
        %604 = vmatprep.subr.bf16.mxu0 0
        %605 = vmatpush1.bf16.msra.mxu0 0
        %606 = vmatprep.subr.bf16.mxu0 0
        %607 = vmatpush1.bf16.msra.mxu0 0
        %608 = vmatprep.subr.bf16.mxu0 0
        %609 = vmatpush1.bf16.msra.mxu0 0
        %610 = vmatprep.subr.bf16.mxu0 0
        %611 = vmatpush1.bf16.msra.mxu0 0
        %612 = vmatprep.subr.bf16.mxu0 0
        %613 = vmatpush1.bf16.msra.mxu0 0
        %614 = vmatprep.subr.bf16.mxu0 0
        %615 = vmatpush1.bf16.msra.mxu0 0
        %616 = vmatprep.subr.bf16.mxu0 0
        %617 = vmatpush1.bf16.msra.mxu0 0
        %618 = vmatprep.subr.bf16.mxu0 0
        %619 = vmatpush1.bf16.msra.mxu0 0
        %620 = vmatprep.subr.bf16.mxu0 0
        %621 = vmatpush1.bf16.msra.mxu0 0
        %622 = vmatprep.subr.bf16.mxu0 0
        %623 = vmatpush1.bf16.msra.mxu0 0
        %624 = vmatprep.subr.bf16.mxu0 0
        %625 = vmatpush1.bf16.msra.mxu0 0
        %626 = vmatprep.subr.bf16.mxu0 0
        %627 = vmatpush1.bf16.msra.mxu0 0
        %628 = vmatprep.mubr.bf16.mxu0 0
        %629 = vmatmul.mubr.bf16.gmra.mrb[0].mxu0 %v594
        %v630 = vpop.f32.mrb[0].mxu0
        %v631 = vadd.f32 0.0, %v630
        %v632 = vpop.f32.mrb[0].mxu0
        %v633 = vpop.f32.mrb[0].mxu0
        %v634 = vpop.f32.mrb[0].mxu0
        %635 = vdwg.mxu0
        %636 = vst.msk [vmem:[%s373] sm:$0xff] %vm529, %v631
        %638 = vrot.lane.b32.xlu0 %v521, 120
        %v639 = vpop.permute.xlu0 %638
        %640 = vrot.lane.b32.xlu0 %v522, 120
        %v641 = vpop.permute.xlu0 %640
        %v643 = vsel %vm529, %v639, 0
        %v646 = vsel %vm529, %v641, 0
        %648 = vmatprep.subr.bf16.mxu0 0
        %649 = vmatpush1.bf16.xpose.msra.mxu0 %v646
        %650 = vmatprep.subr.bf16.mxu0 0
        %651 = vmatpush1.bf16.xpose.msra.mxu0 0
        %652 = vmatprep.subr.bf16.mxu0 0
        %653 = vmatpush1.bf16.xpose.msra.mxu0 0
        %654 = vmatprep.subr.bf16.mxu0 0
        %655 = vmatpush1.bf16.xpose.msra.mxu0 0
        %656 = vmatprep.subr.bf16.mxu0 0
        %657 = vmatpush1.bf16.xpose.msra.mxu0 0
        %658 = vmatprep.subr.bf16.mxu0 0
        %659 = vmatpush1.bf16.xpose.msra.mxu0 0
        %660 = vmatprep.subr.bf16.mxu0 0
        %661 = vmatpush1.bf16.xpose.msra.mxu0 0
        %662 = vmatprep.subr.bf16.mxu0 0
        %663 = vmatpush1.bf16.xpose.msra.mxu0 0
        %664 = vmatprep.subr.bf16.mxu0 0
        %665 = vmatpush1.bf16.xpose.msra.mxu0 0
        %666 = vmatprep.subr.bf16.mxu0 0
        %667 = vmatpush1.bf16.xpose.msra.mxu0 0
        %668 = vmatprep.subr.bf16.mxu0 0
        %669 = vmatpush1.bf16.xpose.msra.mxu0 0
        %670 = vmatprep.subr.bf16.mxu0 0
        %671 = vmatpush1.bf16.xpose.msra.mxu0 0
        %672 = vmatprep.subr.bf16.mxu0 0
        %673 = vmatpush1.bf16.xpose.msra.mxu0 0
        %674 = vmatprep.subr.bf16.mxu0 0
        %675 = vmatpush1.bf16.xpose.msra.mxu0 0
        %676 = vmatprep.subr.bf16.mxu0 0
        %677 = vmatpush1.bf16.xpose.msra.mxu0 0
        %678 = vmatprep.subr.bf16.mxu0 0
        %679 = vmatpush1.bf16.xpose.msra.mxu0 0
        %680 = vmatprep.mubr.bf16.mxu0 0
        %681 = vmatmul.mubr.bf16.gmra.mrb[0].mxu0 %v643
        %v682 = vpop.f32.mrb[0].mxu0
        %v683 = vadd.f32 %v527, %v682
        %v684 = vpop.f32.mrb[0].mxu0
        %v685 = vpop.f32.mrb[0].mxu0
        %v686 = vpop.f32.mrb[0].mxu0
        %687 = vdwg.mxu0
        %v688 = vsel %vm576, %v683, -inf
        %689 = vmax.xlane.f32.xlu0 %v688
        %v690 = vpop.xlane.xlu0 %689
        %v691 = vsub.f32 %v683, %v690
        %v692 = vmul.f32 %v691, 1.442695
        %v693 = vpow.pop %v692
        %v694 = vsel %vm576, %v693, 0.0
        %695 = vadd.xlane.f32.xlu0 %v694
        %v696 = vpop.xlane.xlu0 %695
        %v697 = vrcp.pop %v696
        %v698 = vmul.f32 %v693, %v697
        %v699 = vpack.c.bf16 %v698, %v698
        %700 = vrot.lane.b32.xlu0 %v522, 88
        %v701 = vpop.permute.xlu0 %700
        %v704 = vsel %vm576, %v699, 0
        %706 = vmatprep.subr.bf16.mxu0 0
        %707 = vmatpush1.bf16.msra.mxu0 %v701
        %708 = vmatprep.subr.bf16.mxu0 0
        %709 = vmatpush1.bf16.msra.mxu0 0
        %710 = vmatprep.subr.bf16.mxu0 0
        %711 = vmatpush1.bf16.msra.mxu0 0
        %712 = vmatprep.subr.bf16.mxu0 0
        %713 = vmatpush1.bf16.msra.mxu0 0
        %714 = vmatprep.subr.bf16.mxu0 0
        %715 = vmatpush1.bf16.msra.mxu0 0
        %716 = vmatprep.subr.bf16.mxu0 0
        %717 = vmatpush1.bf16.msra.mxu0 0
        %718 = vmatprep.subr.bf16.mxu0 0
        %719 = vmatpush1.bf16.msra.mxu0 0
        %720 = vmatprep.subr.bf16.mxu0 0
        %721 = vmatpush1.bf16.msra.mxu0 0
        %722 = vmatprep.subr.bf16.mxu0 0
        %723 = vmatpush1.bf16.msra.mxu0 0
        %724 = vmatprep.subr.bf16.mxu0 0
        %725 = vmatpush1.bf16.msra.mxu0 0
        %726 = vmatprep.subr.bf16.mxu0 0
        %727 = vmatpush1.bf16.msra.mxu0 0
        %728 = vmatprep.subr.bf16.mxu0 0
        %729 = vmatpush1.bf16.msra.mxu0 0
        %730 = vmatprep.subr.bf16.mxu0 0
        %731 = vmatpush1.bf16.msra.mxu0 0
        %732 = vmatprep.subr.bf16.mxu0 0
        %733 = vmatpush1.bf16.msra.mxu0 0
        %734 = vmatprep.subr.bf16.mxu0 0
        %735 = vmatpush1.bf16.msra.mxu0 0
        %736 = vmatprep.subr.bf16.mxu0 0
        %737 = vmatpush1.bf16.msra.mxu0 0
        %738 = vmatprep.mubr.bf16.mxu0 0
        %739 = vmatmul.mubr.bf16.gmra.mrb[0].mxu0 %v704
        %v740 = vpop.f32.mrb[0].mxu0
        %v741 = vadd.f32 0.0, %v740
        %v742 = vpop.f32.mrb[0].mxu0
        %v743 = vpop.f32.mrb[0].mxu0
        %v744 = vpop.f32.mrb[0].mxu0
        %745 = vdwg.mxu0
        %747 = vrot.lane.b32.xlu0 %v741, 8
        %v748 = vpop.permute.xlu0 %747
        %vm750 = vcmask 130112
        %751 = vst.msk [vmem:[%s373] sm:$0xff] %vm750, %v748
        %752 = vrot.lane.b32.xlu0 %v521, 112
        %v753 = vpop.permute.xlu0 %752
        %754 = vrot.lane.b32.xlu0 %v522, 112
        %v755 = vpop.permute.xlu0 %754
        %v757 = vsel %vm529, %v753, 0
        %v760 = vsel %vm529, %v755, 0
        %762 = vmatprep.subr.bf16.mxu0 0
        %763 = vmatpush1.bf16.xpose.msra.mxu0 %v760
        %764 = vmatprep.subr.bf16.mxu0 0
        %765 = vmatpush1.bf16.xpose.msra.mxu0 0
        %766 = vmatprep.subr.bf16.mxu0 0
        %767 = vmatpush1.bf16.xpose.msra.mxu0 0
        %768 = vmatprep.subr.bf16.mxu0 0
        %769 = vmatpush1.bf16.xpose.msra.mxu0 0
        %770 = vmatprep.subr.bf16.mxu0 0
        %771 = vmatpush1.bf16.xpose.msra.mxu0 0
        %772 = vmatprep.subr.bf16.mxu0 0
        %773 = vmatpush1.bf16.xpose.msra.mxu0 0
        %774 = vmatprep.subr.bf16.mxu0 0
        %775 = vmatpush1.bf16.xpose.msra.mxu0 0
        %776 = vmatprep.subr.bf16.mxu0 0
        %777 = vmatpush1.bf16.xpose.msra.mxu0 0
        %778 = vmatprep.subr.bf16.mxu0 0
        %779 = vmatpush1.bf16.xpose.msra.mxu0 0
        %780 = vmatprep.subr.bf16.mxu0 0
        %781 = vmatpush1.bf16.xpose.msra.mxu0 0
        %782 = vmatprep.subr.bf16.mxu0 0
        %783 = vmatpush1.bf16.xpose.msra.mxu0 0
        %784 = vmatprep.subr.bf16.mxu0 0
        %785 = vmatpush1.bf16.xpose.msra.mxu0 0
        %786 = vmatprep.subr.bf16.mxu0 0
        %787 = vmatpush1.bf16.xpose.msra.mxu0 0
        %788 = vmatprep.subr.bf16.mxu0 0
        %789 = vmatpush1.bf16.xpose.msra.mxu0 0
        %790 = vmatprep.subr.bf16.mxu0 0
        %791 = vmatpush1.bf16.xpose.msra.mxu0 0
        %792 = vmatprep.subr.bf16.mxu0 0
        %793 = vmatpush1.bf16.xpose.msra.mxu0 0
        %794 = vmatprep.mubr.bf16.mxu0 0
        %795 = vmatmul.mubr.bf16.gmra.mrb[0].mxu0 %v757
        %v796 = vpop.f32.mrb[0].mxu0
        %v797 = vadd.f32 %v527, %v796
        %v798 = vpop.f32.mrb[0].mxu0
        %v799 = vpop.f32.mrb[0].mxu0
        %v800 = vpop.f32.mrb[0].mxu0
        %801 = vdwg.mxu0
        %v802 = vsel %vm576, %v797, -inf
        %803 = vmax.xlane.f32.xlu0 %v802
        %v804 = vpop.xlane.xlu0 %803
        %v805 = vsub.f32 %v797, %v804
        %v806 = vmul.f32 %v805, 1.442695
        %v807 = vpow.pop %v806
        %v808 = vsel %vm576, %v807, 0.0
        %809 = vadd.xlane.f32.xlu0 %v808
        %v810 = vpop.xlane.xlu0 %809
        %v811 = vrcp.pop %v810
        %v812 = vmul.f32 %v807, %v811
        %v813 = vpack.c.bf16 %v812, %v812
        %814 = vrot.lane.b32.xlu0 %v522, 80
        %v815 = vpop.permute.xlu0 %814
        %v818 = vsel %vm576, %v813, 0
        %820 = vmatprep.subr.bf16.mxu0 0
        %821 = vmatpush1.bf16.msra.mxu0 %v815
        %822 = vmatprep.subr.bf16.mxu0 0
        %823 = vmatpush1.bf16.msra.mxu0 0
        %824 = vmatprep.subr.bf16.mxu0 0
        %825 = vmatpush1.bf16.msra.mxu0 0
        %826 = vmatprep.subr.bf16.mxu0 0
        %827 = vmatpush1.bf16.msra.mxu0 0
        %828 = vmatprep.subr.bf16.mxu0 0
        %829 = vmatpush1.bf16.msra.mxu0 0
        %830 = vmatprep.subr.bf16.mxu0 0
        %831 = vmatpush1.bf16.msra.mxu0 0
        %832 = vmatprep.subr.bf16.mxu0 0
        %833 = vmatpush1.bf16.msra.mxu0 0
        %834 = vmatprep.subr.bf16.mxu0 0
        %835 = vmatpush1.bf16.msra.mxu0 0
        %836 = vmatprep.subr.bf16.mxu0 0
        %837 = vmatpush1.bf16.msra.mxu0 0
        %838 = vmatprep.subr.bf16.mxu0 0
        %839 = vmatpush1.bf16.msra.mxu0 0
        %840 = vmatprep.subr.bf16.mxu0 0
        %841 = vmatpush1.bf16.msra.mxu0 0
        %842 = vmatprep.subr.bf16.mxu0 0
        %843 = vmatpush1.bf16.msra.mxu0 0
        %844 = vmatprep.subr.bf16.mxu0 0
        %845 = vmatpush1.bf16.msra.mxu0 0
        %846 = vmatprep.subr.bf16.mxu0 0
        %847 = vmatpush1.bf16.msra.mxu0 0
        %848 = vmatprep.subr.bf16.mxu0 0
        %849 = vmatpush1.bf16.msra.mxu0 0
        %850 = vmatprep.subr.bf16.mxu0 0
        %851 = vmatpush1.bf16.msra.mxu0 0
        %852 = vmatprep.mubr.bf16.mxu0 0
        %853 = vmatmul.mubr.bf16.gmra.mrb[0].mxu0 %v818
        %v854 = vpop.f32.mrb[0].mxu0
        %v855 = vadd.f32 0.0, %v854
        %v856 = vpop.f32.mrb[0].mxu0
        %v857 = vpop.f32.mrb[0].mxu0
        %v858 = vpop.f32.mrb[0].mxu0
        %859 = vdwg.mxu0
        %861 = vrot.lane.b32.xlu0 %v855, 16
        %v862 = vpop.permute.xlu0 %861
        %vm864 = vcmask 195712
        %865 = vst.msk [vmem:[%s373] sm:$0xff] %vm864, %v862
        %866 = vrot.lane.b32.xlu0 %v521, 104
        %v867 = vpop.permute.xlu0 %866
        %868 = vrot.lane.b32.xlu0 %v522, 104
        %v869 = vpop.permute.xlu0 %868
        %v871 = vsel %vm529, %v867, 0
        %v874 = vsel %vm529, %v869, 0
        %876 = vmatprep.subr.bf16.mxu0 0
        %877 = vmatpush1.bf16.xpose.msra.mxu0 %v874
        %878 = vmatprep.subr.bf16.mxu0 0
        %879 = vmatpush1.bf16.xpose.msra.mxu0 0
        %880 = vmatprep.subr.bf16.mxu0 0
        %881 = vmatpush1.bf16.xpose.msra.mxu0 0
        %882 = vmatprep.subr.bf16.mxu0 0
        %883 = vmatpush1.bf16.xpose.msra.mxu0 0
        %884 = vmatprep.subr.bf16.mxu0 0
        %885 = vmatpush1.bf16.xpose.msra.mxu0 0
        %886 = vmatprep.subr.bf16.mxu0 0
        %887 = vmatpush1.bf16.xpose.msra.mxu0 0
        %888 = vmatprep.subr.bf16.mxu0 0
        %889 = vmatpush1.bf16.xpose.msra.mxu0 0
        %890 = vmatprep.subr.bf16.mxu0 0
        %891 = vmatpush1.bf16.xpose.msra.mxu0 0
        %892 = vmatprep.subr.bf16.mxu0 0
        %893 = vmatpush1.bf16.xpose.msra.mxu0 0
        %894 = vmatprep.subr.bf16.mxu0 0
        %895 = vmatpush1.bf16.xpose.msra.mxu0 0
        %896 = vmatprep.subr.bf16.mxu0 0
        %897 = vmatpush1.bf16.xpose.msra.mxu0 0
        %898 = vmatprep.subr.bf16.mxu0 0
        %899 = vmatpush1.bf16.xpose.msra.mxu0 0
        %900 = vmatprep.subr.bf16.mxu0 0
        %901 = vmatpush1.bf16.xpose.msra.mxu0 0
        %902 = vmatprep.subr.bf16.mxu0 0
        %903 = vmatpush1.bf16.xpose.msra.mxu0 0
        %904 = vmatprep.subr.bf16.mxu0 0
        %905 = vmatpush1.bf16.xpose.msra.mxu0 0
        %906 = vmatprep.subr.bf16.mxu0 0
        %907 = vmatpush1.bf16.xpose.msra.mxu0 0
        %908 = vmatprep.mubr.bf16.mxu0 0
        %909 = vmatmul.mubr.bf16.gmra.mrb[0].mxu0 %v871
        %v910 = vpop.f32.mrb[0].mxu0
        %v911 = vadd.f32 %v527, %v910
        %v912 = vpop.f32.mrb[0].mxu0
        %v913 = vpop.f32.mrb[0].mxu0
        %v914 = vpop.f32.mrb[0].mxu0
        %915 = vdwg.mxu0
        %v916 = vsel %vm576, %v911, -inf
        %917 = vmax.xlane.f32.xlu0 %v916
        %v918 = vpop.xlane.xlu0 %917
        %v919 = vsub.f32 %v911, %v918
        %v920 = vmul.f32 %v919, 1.442695
        %v921 = vpow.pop %v920
        %v922 = vsel %vm576, %v921, 0.0
        %923 = vadd.xlane.f32.xlu0 %v922
        %v924 = vpop.xlane.xlu0 %923
        %v925 = vrcp.pop %v924
        %v926 = vmul.f32 %v921, %v925
        %v927 = vpack.c.bf16 %v926, %v926
        %928 = vrot.lane.b32.xlu0 %v522, 72
        %v929 = vpop.permute.xlu0 %928
        %v932 = vsel %vm576, %v927, 0
        %934 = vmatprep.subr.bf16.mxu0 0
        %935 = vmatpush1.bf16.msra.mxu0 %v929
        %936 = vmatprep.subr.bf16.mxu0 0
        %937 = vmatpush1.bf16.msra.mxu0 0
        %938 = vmatprep.subr.bf16.mxu0 0
        %939 = vmatpush1.bf16.msra.mxu0 0
        %940 = vmatprep.subr.bf16.mxu0 0
        %941 = vmatpush1.bf16.msra.mxu0 0
        %942 = vmatprep.subr.bf16.mxu0 0
        %943 = vmatpush1.bf16.msra.mxu0 0
        %944 = vmatprep.subr.bf16.mxu0 0
        %945 = vmatpush1.bf16.msra.mxu0 0
        %946 = vmatprep.subr.bf16.mxu0 0
        %947 = vmatpush1.bf16.msra.mxu0 0
        %948 = vmatprep.subr.bf16.mxu0 0
        %949 = vmatpush1.bf16.msra.mxu0 0
        %950 = vmatprep.subr.bf16.mxu0 0
        %951 = vmatpush1.bf16.msra.mxu0 0
        %952 = vmatprep.subr.bf16.mxu0 0
        %953 = vmatpush1.bf16.msra.mxu0 0
        %954 = vmatprep.subr.bf16.mxu0 0
        %955 = vmatpush1.bf16.msra.mxu0 0
        %956 = vmatprep.subr.bf16.mxu0 0
        %957 = vmatpush1.bf16.msra.mxu0 0
        %958 = vmatprep.subr.bf16.mxu0 0
        %959 = vmatpush1.bf16.msra.mxu0 0
        %960 = vmatprep.subr.bf16.mxu0 0
        %961 = vmatpush1.bf16.msra.mxu0 0
        %962 = vmatprep.subr.bf16.mxu0 0
        %963 = vmatpush1.bf16.msra.mxu0 0
        %964 = vmatprep.subr.bf16.mxu0 0
        %965 = vmatpush1.bf16.msra.mxu0 0
        %966 = vmatprep.mubr.bf16.mxu0 0
        %967 = vmatmul.mubr.bf16.gmra.mrb[0].mxu0 %v932
        %v968 = vpop.f32.mrb[0].mxu0
        %v969 = vadd.f32 0.0, %v968
        %v970 = vpop.f32.mrb[0].mxu0
        %v971 = vpop.f32.mrb[0].mxu0
        %v972 = vpop.f32.mrb[0].mxu0
        %973 = vdwg.mxu0
        %975 = vrot.lane.b32.xlu0 %v969, 24
        %v976 = vpop.permute.xlu0 %975
        %vm978 = vcmask 261312
        %979 = vst.msk [vmem:[%s373] sm:$0xff] %vm978, %v976
        %s980 = sand.u32 %s198, 1
        %s981 = scalar_lea.sflag [#allocation4], %s980
        %s982 = sand.u32 %s198, 1
        %s983 = smul.addr %s982, 8
        %s984 = scalar_lea.vmem [#allocation10], %s983
        // Predicated region
        $region65: #{tpu_custom_call.1} parent=47 // pred_check
          %p985 = pneg %p208
        $region66: #{tpu_custom_call.1} parent=47 // pred_check_branch
          %987 = sbr.rel (%p985) target = $region68
        $region67: #{tpu_custom_call.1} parent=47 // pred_region
          %s989 = ssub.s32 128, 128
          %990 = vsyncadd %s981, %s989
          %s991 = smul.addr %s28, 128
          %s992 = scalar_lea.hbm %s7, %s991
          %s994 = sshll.u32 %s984, 4
          %s995 = int_to_ptr.vmem [resolvable:$true] %s994
          %997 = dma.vmem_to_hbm [thread:$0]  %s995, 128, %s992, %s981
        $region68: #{tpu_custom_call.1} parent=47 // pred_fallthru
          _
      $region48: #{tpu_custom_call.1} parent=5 // pred_fallthru
        _
      %p998 = scmp.le.s32.totalorder 2, %s23
      // Predicated region
      $region69: #{tpu_custom_call.1} parent=5 // pred_check
        %p999 = pneg %p998
      $region70: #{tpu_custom_call.1} parent=5 // pred_check_branch
        %1001 = sbr.rel (%p999) target = $region72
      $region71: #{tpu_custom_call.1} parent=5 // pred_region
        %s1002 = ssub.s32 %s23, 2
        // Predicated region
        $region73: #{tpu_custom_call.1} parent=71 // pred_check
          %p1003 = pneg %p214
        $region74: #{tpu_custom_call.1} parent=71 // pred_check_branch
          %1005 = sbr.rel (%p1003) target = $region76
        $region75: #{tpu_custom_call.1} parent=71 // pred_region
          %s1006 = sand.u32 %s199, 1
          %s1007 = scalar_lea.sflag [#allocation4], %s1006
          %s1008 = sand.u32 %s199, 1
          %s1009 = smul.addr %s1008, 8
          %s1010 = scalar_lea.vmem [#allocation10], %s1009
          %1011 = dma.done %s1007, 128
        $region76: #{tpu_custom_call.1} parent=71 // pred_fallthru
          _
      $region72: #{tpu_custom_call.1} parent=5 // pred_fallthru
        _
    $region6: #{tpu_custom_call.1} parent=1 // loop_footer
      %s27 = sadd.s32 1, %s23
    $region7: #{tpu_custom_call.1} parent=1 // loop_footer_branch
      %22 = sbr.rel target = $region3
    $region8: #{tpu_custom_call.1} parent=1 // loop_exit
      _
    %1012 = vsyncpa [#allocation3], 1
    %s1013 = scalar_lea.sflag [#allocation3], 1
    %1014 = vsyncpa %s1013, 1
    %1015 = vsyncpa [#allocation6], 1
    %s1016 = scalar_lea.sflag [#allocation6], 1
    %1017 = vsyncpa %s1016, 1
    %1018 = vsyncpa [#allocation9], 1
    %1019 = vsyncpa [#allocation4], 1
    %s1020 = scalar_lea.sflag [#allocation4], 1
    %1021 = vsyncpa %s1020, 1

</llo_original>
